<compile_context>
chip_gen: v7x
topology: tpu7x:2x2x1
jax: 0.10.0
libtpu: 0.0.40
codegen_flags: <defaults>
</compile_context>

<pallas_src>
import jax
import jax.numpy as jnp
from jax.experimental import pallas as pl
from jax.experimental.pallas import tpu as pltpu

EMBEDDING_DIM = 64


def _round_up(x, m):
    return -(-x // m) * m


def _default_lane_pack():
    # v6e / v7x: 256-wide MXU -> pack 4 rows per lane row (Dp = 256).
    # v5e / unknown: 128-wide MXU -> pack 2 (Dp = 128).
    try:
        kind = jax.devices()[0].device_kind.lower()
    except Exception:
        return 2
    return 4 if ("v6" in kind or "v7" in kind) else 2


# ---------------------------------------------------------------------------
# Kernel 1: fused gather + linear1 + linear2 (small embedding tables).
# The row gather is a one-hot MXU matmul:
#   y = onehot(flat_idx) @ kron(eye(P), emb) @ kron(eye(P), W_f) + b_packed
# ---------------------------------------------------------------------------
def _gather_fused_kernel(idx_ref, emb_ref, w_ref, b_ref, o_ref):
    """idx_ref: [1, TR, P] int32 flat one-hot positions (g*N_pad + node)
       emb_ref: [P*N_pad, Dp] block-diagonal packed embedding table (resident)
       w_ref  : [Dp, Dp]      block-diagonal fused linear weight  (resident)
       b_ref  : [1, Dp]       tiled fused bias                    (resident)
       o_ref  : [TR, Dp]      lane-packed output tile
    """
    idx = idx_ref[0]                                    # [TR, P]
    tr = idx.shape[0]
    pn = emb_ref.shape[0]
    col = jax.lax.broadcasted_iota(jnp.int32, (tr, pn), 1)
    onehot = jnp.zeros((tr, pn), dtype=emb_ref.dtype)
    for g in range(idx.shape[1]):                       # static, P iterations
        onehot = onehot + (col == idx[:, g:g + 1]).astype(emb_ref.dtype)
    # Gather (one-hot matmul) -> packed activations, then fused linear.
    x = jnp.dot(onehot, emb_ref[...], preferred_element_type=jnp.float32)
    y = jnp.dot(x.astype(w_ref.dtype), w_ref[...],
                preferred_element_type=jnp.float32) + b_ref[...]
    o_ref[...] = y.astype(o_ref.dtype)


# ---------------------------------------------------------------------------
# Kernel 2 (fallback for large tables): fused linear on lane-packed,
# pre-gathered activations streamed from HBM.
# ---------------------------------------------------------------------------
def _fused_linear_kernel(x_ref, w_ref, b_ref, o_ref):
    acc = jnp.dot(x_ref[...], w_ref[...], preferred_element_type=jnp.float32)
    o_ref[...] = (acc + b_ref[...]).astype(o_ref.dtype)


def node2vec_forward(node, emb_table, w1, b1, w2, b2, *,
                     tile_b=2048, lane_pack=None, use_bf16=False):
    """Forward pass of Node2Vec.

    node      : [B] int32 node indices
    emb_table : [num_nodes, D] float32
    w1, w2    : [D, D] float32 (PyTorch layout: [out_features, in_features])
    b1, b2    : [D] float32
    """
    num_nodes, D = emb_table.shape
    assert num_nodes > 0, "padding uses node index 0; table must be non-empty"
    B = node.shape[0]
    P = _default_lane_pack() if lane_pack is None else int(lane_pack)
    Dp = D * P
    assert Dp % 128 == 0, "packed feature dim must be lane-dense"

    compute_dtype = jnp.bfloat16 if use_bf16 else jnp.float32

    # ---- one-time parameter prep (plain JAX; fuses under jax.jit) ----------
    w_fused = (w1.T @ w2.T).astype(jnp.float32)                   # [D, D]
    b_fused = (b1 @ w2.T + b2).astype(jnp.float32)                # [D]
    w_packed = jnp.kron(jnp.eye(P, dtype=jnp.float32), w_fused)   # [Dp, Dp]
    b_packed = jnp.tile(b_fused, P).reshape(1, Dp)                # [1, Dp]

    # ---- adaptive, aligned batch tiling -------------------------------------
    tile_b = max(8 * P, min(int(tile_b), _round_up(B, 8 * P)))
    tile_b = _round_up(tile_b, 8 * P)
    B_pad = _round_up(B, tile_b)
    # Give megacore (v7x has 2 TensorCores) at least 2 grid steps if alignment
    # allows; harmless elsewhere.
    if B_pad == tile_b and tile_b % (16 * P) == 0:
        tile_b //= 2
    num_tiles = B_pad // tile_b
    TR = tile_b // P                      # packed rows per grid step
    assert TR % 8 == 0, "packed tile rows must be sublane-aligned"

    node_pad = jnp.pad(node.astype(jnp.int32), (0, B_pad - B))   # pad w/ node 0 (valid)

    N_pad = _round_up(num_nodes, 8)
    in_kernel_gather = (P * N_pad) <= 1024   # one-hot + resident table fit VMEM cheaply

    if in_kernel_gather:
        # Gather fused into the kernel: no HBM round trip of the activations.
        emb_pad = jnp.pad(emb_table.astype(jnp.float32),
                          ((0, N_pad - num_nodes), (0, 0)))              # [N_pad, D]
        emb_packed = jnp.kron(jnp.eye(P, dtype=jnp.float32), emb_pad)    # [P*N_pad, Dp]
        flat_idx = (node_pad.reshape(B_pad // P, P)
                    + N_pad * jnp.arange(P, dtype=jnp.int32)[None, :])
        flat_idx = flat_idx.reshape(num_tiles, TR, P)

        out_packed = pl.pallas_call(
            _gather_fused_kernel,
            out_shape=jax.ShapeDtypeStruct((B_pad // P, Dp), jnp.float32),
            grid_spec=pltpu.PrefetchScalarGridSpec(
                num_scalar_prefetch=0,
                grid=(num_tiles,),
                in_specs=[
                    pl.BlockSpec((1, TR, P), lambda i: (i, 0, 0)),       # node indices
                    pl.BlockSpec((P * N_pad, Dp), lambda i: (0, 0)),     # emb (resident)
                    pl.BlockSpec((Dp, Dp), lambda i: (0, 0)),            # W_f (resident)
                    pl.BlockSpec((1, Dp), lambda i: (0, 0)),             # bias (resident)
                ],
                out_specs=pl.BlockSpec((TR, Dp), lambda i: (i, 0)),
            ),
            compiler_params=pltpu.CompilerParams(
                dimension_semantics=("parallel",),
            ),
        )(flat_idx,
          emb_packed.astype(compute_dtype),
          w_packed.astype(compute_dtype),
          b_packed)
    else:
        # Large table fallback: XLA gather outside, stream lane-packed rows.
        # TODO(synk): replace with an in-kernel manual DMA gather
        # (memory_space=pl.ANY table + scalar-prefetched indices) when indices
        # are sorted/contiguous enough to make 256 B/row DMAs worthwhile.
        x = jnp.take(emb_table, node_pad, axis=0).astype(compute_dtype)   # [B_pad, D]
        x_packed = x.reshape(B_pad // P, Dp)

        out_packed = pl.pallas_call(
            _fused_linear_kernel,
            out_shape=jax.ShapeDtypeStruct((B_pad // P, Dp), jnp.float32),
            grid_spec=pltpu.PrefetchScalarGridSpec(
                num_scalar_prefetch=0,
                grid=(num_tiles,),
                in_specs=[
                    pl.BlockSpec((TR, Dp), lambda i: (i, 0)),            # x tile
                    pl.BlockSpec((Dp, Dp), lambda i: (0, 0)),            # W_f (resident)
                    pl.BlockSpec((1, Dp), lambda i: (0, 0)),             # bias (resident)
                ],
                out_specs=pl.BlockSpec((TR, Dp), lambda i: (i, 0)),
            ),
            compiler_params=pltpu.CompilerParams(
                dimension_semantics=("parallel",),
            ),
        )(x_packed, w_packed.astype(compute_dtype), b_packed)

    # Undo lane packing (bit-identical row-major layout) and drop padding.
    return out_packed.reshape(B_pad, D)[:B]


def _reference_forward(node, emb_table, w1, b1, w2, b2):
    x = jnp.take(emb_table, node, axis=0)
    h = x @ w1.T + b1
    return h @ w2.T + b2


if __name__ == "__main__":
    key = jax.random.PRNGKey(0)
    num_nodes = 32
    D = EMBEDDING_DIM
    B = 8

    k_emb, k_w1, k_b1, k_w2, k_b2, k_node = jax.random.split(key, 6)

    # nn.Embedding ~ N(0,1); nn.Linear ~ U(-1/sqrt(in), 1/sqrt(in)).
    emb_table = jax.random.normal(k_emb, (num_nodes, D), dtype=jnp.float32)
    bound = 1.0 / jnp.sqrt(jnp.float32(D))
    w1 = jax.random.uniform(k_w1, (D, D), jnp.float32, -bound, bound)
    b1 = jax.random.uniform(k_b1, (D,), jnp.float32, -bound, bound)
    w2 = jax.random.uniform(k_w2, (D, D), jnp.float32, -bound, bound)
    b2 = jax.random.uniform(k_b2, (D,), jnp.float32, -bound, bound)

    node = jax.random.randint(k_node, (B,), 0, num_nodes, dtype=jnp.int32)

    fwd = jax.jit(node2vec_forward)
    out = fwd(node, emb_table, w1, b1, w2, b2)
    out = jax.block_until_ready(out)

    ref = _reference_forward(node, emb_table, w1, b1, w2, b2)
    assert out.shape == (B, D)
    assert jnp.allclose(out, ref, atol=1e-4, rtol=1e-4), "mismatch vs reference"

    print("KERNEL_OK")
</pallas_src>

<mosaic_0001>
module attributes {stable_mosaic.version = 11 : i64} {
  func.func @_gather_fused_kernel(%arg0: i32, %arg1: memref<1x8x2xi32, #tpu.memory_space<vmem>>, %arg2: memref<64x128xf32, #tpu.memory_space<vmem>>, %arg3: memref<128x128xf32, #tpu.memory_space<vmem>>, %arg4: memref<1x128xf32, #tpu.memory_space<vmem>>, %arg5: memref<8x128xf32, #tpu.memory_space<vmem>>) attributes {dimension_semantics = [#tpu.dimension_semantics<parallel>], iteration_bounds = array<i64: 1>, scalar_prefetch = 0 : i64, scratch_operands = 0 : i64, tpu.core_type = #tpu.core_type<tc>, window_params = [{transform_indices = @transform_0, window_bounds = array<i64: 1, 8, 2>}, {pipeline_mode = #tpu.pipeline_mode<synchronous>, transform_indices = @transform_1, window_bounds = array<i64: 64, 128>}, {pipeline_mode = #tpu.pipeline_mode<synchronous>, transform_indices = @transform_2, window_bounds = array<i64: 128, 128>}, {pipeline_mode = #tpu.pipeline_mode<synchronous>, transform_indices = @transform_3, window_bounds = array<i64: 1, 128>}, {transform_indices = @transform_4, window_bounds = array<i64: 8, 128>}]} {
    %c0 = arith.constant 0 : index
    %c0_0 = arith.constant 0 : index
    %c0_1 = arith.constant 0 : index
    %0 = vector.load %arg1[%c0, %c0_0, %c0_1] : memref<1x8x2xi32, #tpu.memory_space<vmem>>, vector<1x8x2xi32>
    %1 = vector.shape_cast %0 : vector<1x8x2xi32> to vector<8x2xi32>
    %2 = tpu.iota {dimensions = array<i32: 1>} : vector<8x64xi32>
    %cst = arith.constant 0.000000e+00 : f32
    %3 = vector.broadcast %cst : f32 to vector<8x64xf32>
    %4 = vector.extract_strided_slice %1 {offsets = [0, 0], sizes = [8, 1], strides = [1, 1]} : vector<8x2xi32> to vector<8x1xi32>
    %5 = vector.broadcast %4 : vector<8x1xi32> to vector<8x64xi32>
    %6 = arith.cmpi eq, %2, %5 : vector<8x64xi32>
    %7 = arith.extui %6 : vector<8x64xi1> to vector<8x64xi32>
    %8 = arith.sitofp %7 : vector<8x64xi32> to vector<8x64xf32>
    %9 = arith.addf %3, %8 : vector<8x64xf32>
    %10 = vector.extract_strided_slice %1 {offsets = [0, 1], sizes = [8, 1], strides = [1, 1]} : vector<8x2xi32> to vector<8x1xi32>
    %11 = vector.broadcast %10 : vector<8x1xi32> to vector<8x64xi32>
    %12 = arith.cmpi eq, %2, %11 : vector<8x64xi32>
    %13 = arith.extui %12 : vector<8x64xi1> to vector<8x64xi32>
    %14 = arith.sitofp %13 : vector<8x64xi32> to vector<8x64xf32>
    %15 = arith.addf %9, %14 : vector<8x64xf32>
    %c0_2 = arith.constant 0 : index
    %c0_3 = arith.constant 0 : index
    %16 = vector.load %arg2[%c0_2, %c0_3] : memref<64x128xf32, #tpu.memory_space<vmem>>, vector<64x128xf32>
    %cst_4 = arith.constant dense<0.000000e+00> : vector<8x128xf32>
    %17 = tpu.matmul %15, %16, %cst_4 {dimension_numbers = #tpu.dot_dimension_numbers<[1], [0], [0], [1], [0, 0, 1, 1], [], []>} : vector<8x64xf32>, vector<64x128xf32>, vector<8x128xf32> -> vector<8x128xf32>
    %c0_5 = arith.constant 0 : index
    %c0_6 = arith.constant 0 : index
    %18 = vector.load %arg3[%c0_5, %c0_6] : memref<128x128xf32, #tpu.memory_space<vmem>>, vector<128x128xf32>
    %cst_7 = arith.constant dense<0.000000e+00> : vector<8x128xf32>
    %19 = tpu.matmul %17, %18, %cst_7 {dimension_numbers = #tpu.dot_dimension_numbers<[1], [0], [0], [1], [0, 0, 1, 1], [], []>} : vector<8x128xf32>, vector<128x128xf32>, vector<8x128xf32> -> vector<8x128xf32>
    %c0_8 = arith.constant 0 : index
    %c0_9 = arith.constant 0 : index
    %20 = vector.load %arg4[%c0_8, %c0_9] : memref<1x128xf32, #tpu.memory_space<vmem>>, vector<1x128xf32>
    %21 = vector.broadcast %20 : vector<1x128xf32> to vector<8x128xf32>
    %22 = arith.addf %19, %21 : vector<8x128xf32>
    %c0_10 = arith.constant 0 : index
    %c0_11 = arith.constant 0 : index
    %23 = vector.load %arg5[%c0_10, %c0_11] : memref<8x128xf32, #tpu.memory_space<vmem>>, vector<8x128xf32>
    tpu.vector_store %arg5[%c0_10, %c0_11], %22 {strides = array<i32>} : memref<8x128xf32, #tpu.memory_space<vmem>>, vector<8x128xf32>,
    return
  }
  func.func @transform_0(%arg0: i32) -> (i32, i32, i32) {
    %c0_i32 = arith.constant 0 : i32
    %c0_i32_0 = arith.constant 0 : i32
    %c0_i32_1 = arith.constant 0 : i32
    return %arg0, %c0_i32, %c0_i32_0 : i32, i32, i32
  }
  func.func @transform_1(%arg0: i32) -> (i32, i32) {
    %c0_i32 = arith.constant 0 : i32
    %c0_i32_0 = arith.constant 0 : i32
    %c0_i32_1 = arith.constant 0 : i32
    return %c0_i32, %c0_i32_0 : i32, i32
  }
  func.func @transform_2(%arg0: i32) -> (i32, i32) {
    %c0_i32 = arith.constant 0 : i32
    %c0_i32_0 = arith.constant 0 : i32
    %c0_i32_1 = arith.constant 0 : i32
    return %c0_i32, %c0_i32_0 : i32, i32
  }
  func.func @transform_3(%arg0: i32) -> (i32, i32) {
    %c0_i32 = arith.constant 0 : i32
    %c0_i32_0 = arith.constant 0 : i32
    %c0_i32_1 = arith.constant 0 : i32
    return %c0_i32, %c0_i32_0 : i32, i32
  }
  func.func @transform_4(%arg0: i32) -> (i32, i32) {
    %c0_i32 = arith.constant 0 : i32
    %c0_i32_0 = arith.constant 0 : i32
    return %arg0, %c0_i32 : i32, i32
  }
}

</mosaic_0001>

<llo_original>
// kernel: tile.8
$region0: #{tile.8}
  #allocation0 [shape = 's32[1]{0}', space=sflag, size = 0x4, scoped, tag = 'scoped memory for tile.8']
  %s0 = inlined_call_operand.vmem [shape: f32[64], index: 0, kind: input, shape index: {}]
  %s1 = inlined_call_operand.vmem [shape: f32[2,64], index: 1, kind: output, shape index: {}]
  // Predicated region
  $region2: #{tile.8} parent=0 // pred_check
    _
  $region3: #{tile.8} parent=0 // pred_check_branch
    %3 = sbr.rel (0) target = $region5
  $region4: #{tile.8} parent=0 // pred_region
    _
  $region5: #{tile.8} parent=0 // pred_fallthru
    _
  %v4 = vld [vmem:[%s0] ss:$0 sm:$0xff]
  %5 = vst [vmem:[%s1] sm:$0x3] %v4

// kernel: tile.9
$region0: #{tile.9}
  %s0 = inlined_call_operand.vmem [shape: f32[2,64], index: 0, kind: input, shape index: {}]
  %s1 = inlined_call_operand.vmem [shape: f32[1,128], index: 1, kind: output, shape index: {}]
  $region1: #{tile.9} parent=0
    #allocation0 [shape = 'u8[4096]{0}', space=vmem, size = 0x1000, scoped, tag = 'scoped mem for output reshape']
    #allocation1 [shape = 'u8[4096]{0}', space=vmem, size = 0x1000, scoped, tag = 'scoped mem for input reshape']
    %s3 = sshllo.u32 0, 2
    %v4 = vld [vmem:[%s0] sm:%s3]
    %5 = vst [vmem:[#allocation1] sm:%s3] %v4
    %v6 = vld [vmem:[#allocation1] sm:$0x1]
    %vm7 = vcmask 523264
    %8 = vst.msk [vmem:[#allocation0] sm:$0x1] %vm7, %v6
    %s9 = scalar_lea.vmem [#allocation1], 1
    %v10 = vld [vmem:[%s9] sm:$0x1]
    %11 = vrot.lane.b32.xlu0 %v10, 64
    %v12 = vpop.permute.xlu0 %11
    %vm13 = vcmask 1048064
    %14 = vst.msk [vmem:[#allocation0] sm:$0x1] %vm13, %v12
    %s16 = sshllo.u32 0, 1
    %v18 = vld [vmem:[#allocation0] sm:%s16]
    %s19 = sshllo.u32 0, 1
    %20 = vst [vmem:[%s1] sm:%s19] %v18

// kernel: node2vec_forward.1
$region0: #{node2vec_forward.1}
  #allocation0 [shape = 'u32[]', space=smem, size = 0x4, offset = 0x4, fixed_abs, tag = 'smem constant byte address 0x4 - core index']
  #allocation1 [shape = 'u32[144,128]{1,0:T(1,128)}', space=vmem, size = 0x12000, scoped, tag = 'internal scratch']
  %s0 = inlined_call_operand.vmem [shape: s32[1,8,2], index: 0, kind: input, shape index: {}]
  %s1 = inlined_call_operand.vmem [shape: f32[64,128], index: 1, kind: input, shape index: {}]
  %s2 = inlined_call_operand.vmem [shape: f32[128,128], index: 2, kind: input, shape index: {}]
  %s3 = inlined_call_operand.vmem [shape: f32[1,128], index: 3, kind: input, shape index: {}]
  %s4 = inlined_call_operand.vmem [shape: f32[8,128], index: 4, kind: output, shape index: {}]
  %s5 = sld [smem:[#allocation0]]
  $region26: #{node2vec_forward.1} parent=0
    _
  %s7 = ssub.s32 1, %s5
  %s8 = scalar_select 0, %s7, %s5
  // Predicated region
  $region2: #{node2vec_forward.1} parent=0 // pred_check
    _
  $region3: #{node2vec_forward.1} parent=0 // pred_check_branch
    %10 = sbr.rel (0) target = $region5
  $region4: #{node2vec_forward.1} parent=0 // pred_region
    _
  $region5: #{node2vec_forward.1} parent=0 // pred_fallthru
    _
  // Predicated region
  $region6: #{node2vec_forward.1} parent=0 // pred_check
    _
  $region7: #{node2vec_forward.1} parent=0 // pred_check_branch
    %12 = sbr.rel (0) target = $region9
  $region8: #{node2vec_forward.1} parent=0 // pred_region
    _
  $region9: #{node2vec_forward.1} parent=0 // pred_fallthru
    _
  // Predicated region
  $region10: #{node2vec_forward.1} parent=0 // pred_check
    _
  $region11: #{node2vec_forward.1} parent=0 // pred_check_branch
    %14 = sbr.rel (0) target = $region13
  $region12: #{node2vec_forward.1} parent=0 // pred_region
    _
  $region13: #{node2vec_forward.1} parent=0 // pred_fallthru
    _
  // Predicated region
  $region14: #{node2vec_forward.1} parent=0 // pred_check
    _
  $region15: #{node2vec_forward.1} parent=0 // pred_check_branch
    %16 = sbr.rel (0) target = $region17
  $region16: #{node2vec_forward.1} parent=0 // pred_region
    _
  $region17: #{node2vec_forward.1} parent=0 // pred_fallthru
    _
  %v17 = vld [vmem:[%s0] sm:$0xff]
  %v18 = vlaneseq
  %v19 = vand.u32 %v18, 127
  %20 = vset.pattern.permute.xlu0 0
  %21 = vperm.xlu0 %20, %v17
  %v22 = vpop.permute.xlu0 %21
  %vm23 = vcmp.eq.s32.totalorder %v19, %v22
  %v24 = vsel %vm23, 1, 0
  %v25 = vcvt.s32.f32 %v24
  %v26 = vadd.f32 %v25, 0.0
  %27 = vset.pattern.permute.xlu0 1
  %28 = vperm.xlu0 %27, %v17
  %v29 = vpop.permute.xlu0 %28
  %vm30 = vcmp.eq.s32.totalorder %v19, %v29
  %v31 = vsel %vm30, 1, 0
  %v32 = vcvt.s32.f32 %v31
  %v33 = vadd.f32 %v26, %v32
  %v34 = vld [vmem:[%s1] sm:$0xff]
  %v35 = vld [vmem:[%s1 + $0x8] sm:$0xff]
  %v36 = vld [vmem:[%s1 + $0x10] sm:$0xff]
  %v37 = vld [vmem:[%s1 + $0x18] sm:$0xff]
  %v38 = vld [vmem:[%s1 + $0x20] sm:$0xff]
  %v39 = vld [vmem:[%s1 + $0x28] sm:$0xff]
  %v40 = vld [vmem:[%s1 + $0x30] sm:$0xff]
  %v41 = vld [vmem:[%s1 + $0x38] sm:$0xff]
  %vm42 = vcmask 523264
  %v44 = vsel %vm42, %v33, 0
  %46 = vmatprep.subr.mxu0 0.0
  %47 = vmatpush1.msra.mxu0 %v34
  %48 = vmatprep.subr.mxu0 0.0
  %49 = vmatpush1.msra.mxu0 %v35
  %50 = vmatprep.subr.mxu0 0.0
  %51 = vmatpush1.msra.mxu0 %v36
  %52 = vmatprep.subr.mxu0 0.0
  %53 = vmatpush1.msra.mxu0 %v37
  %54 = vmatprep.subr.mxu0 0.0
  %55 = vmatpush1.msra.mxu0 %v38
  %56 = vmatprep.subr.mxu0 0.0
  %57 = vmatpush1.msra.mxu0 %v39
  %58 = vmatprep.subr.mxu0 0.0
  %59 = vmatpush1.msra.mxu0 %v40
  %60 = vmatprep.subr.mxu0 0.0
  %61 = vmatpush1.msra.mxu0 %v41
  %62 = vmatprep.subr.mxu0 0.0
  %63 = vmatpush1.msra.mxu0 0.0
  %64 = vmatprep.subr.mxu0 0.0
  %65 = vmatpush1.msra.mxu0 0.0
  %66 = vmatprep.subr.mxu0 0.0
  %67 = vmatpush1.msra.mxu0 0.0
  %68 = vmatprep.subr.mxu0 0.0
  %69 = vmatpush1.msra.mxu0 0.0
  %70 = vmatprep.subr.mxu0 0.0
  %71 = vmatpush1.msra.mxu0 0.0
  %72 = vmatprep.subr.mxu0 0.0
  %73 = vmatpush1.msra.mxu0 0.0
  %74 = vmatprep.subr.mxu0 0.0
  %75 = vmatpush1.msra.mxu0 0.0
  %76 = vmatprep.subr.mxu0 0.0
  %77 = vmatpush1.msra.mxu0 0.0
  %78 = vmatprep.subr.mxu0 0.0
  %79 = vmatpush1.msra.mxu0 0.0
  %80 = vmatprep.subr.mxu0 0.0
  %81 = vmatpush1.msra.mxu0 0.0
  %82 = vmatprep.subr.mxu0 0.0
  %83 = vmatpush1.msra.mxu0 0.0
  %84 = vmatprep.subr.mxu0 0.0
  %85 = vmatpush1.msra.mxu0 0.0
  %86 = vmatprep.subr.mxu0 0.0
  %87 = vmatpush1.msra.mxu0 0.0
  %88 = vmatprep.subr.mxu0 0.0
  %89 = vmatpush1.msra.mxu0 0.0
  %90 = vmatprep.subr.mxu0 0.0
  %91 = vmatpush1.msra.mxu0 0.0
  %92 = vmatprep.subr.mxu0 0.0
  %93 = vmatpush1.msra.mxu0 0.0
  %94 = vmatprep.subr.mxu0 0.0
  %95 = vmatpush1.msra.mxu0 0.0
  %96 = vmatprep.subr.mxu0 0.0
  %97 = vmatpush1.msra.mxu0 0.0
  %98 = vmatprep.subr.mxu0 0.0
  %99 = vmatpush1.msra.mxu0 0.0
  %100 = vmatprep.subr.mxu0 0.0
  %101 = vmatpush1.msra.mxu0 0.0
  %102 = vmatprep.subr.mxu0 0.0
  %103 = vmatpush1.msra.mxu0 0.0
  %104 = vmatprep.subr.mxu0 0.0
  %105 = vmatpush1.msra.mxu0 0.0
  %106 = vmatprep.subr.mxu0 0.0
  %107 = vmatpush1.msra.mxu0 0.0
  %108 = vmatprep.subr.mxu0 0.0
  %109 = vmatpush1.msra.mxu0 0.0
  %110 = vmatprep.mubr.f32.mxu0 0.0
  %111 = vmatmul.mubr.f32.gmra.mrb[0].mxu0 %v44
  %v112 = vpop.f32.mrb[0].mxu0
  %v113 = vadd.f32 0.0, %v112
  %v114 = vpop.f32.mrb[0].mxu0
  %115 = vdwg.mxu0
  %v116 = vld [vmem:[%s2] sm:$0xff]
  %v117 = vld [vmem:[%s2 + $0x8] sm:$0xff]
  %v118 = vld [vmem:[%s2 + $0x10] sm:$0xff]
  %v119 = vld [vmem:[%s2 + $0x18] sm:$0xff]
  %v120 = vld [vmem:[%s2 + $0x20] sm:$0xff]
  %v121 = vld [vmem:[%s2 + $0x28] sm:$0xff]
  %v122 = vld [vmem:[%s2 + $0x30] sm:$0xff]
  %v123 = vld [vmem:[%s2 + $0x38] sm:$0xff]
  %v124 = vld [vmem:[%s2 + $0x40] sm:$0xff]
  %v125 = vld [vmem:[%s2 + $0x48] sm:$0xff]
  %v126 = vld [vmem:[%s2 + $0x50] sm:$0xff]
  %v127 = vld [vmem:[%s2 + $0x58] sm:$0xff]
  %v128 = vld [vmem:[%s2 + $0x60] sm:$0xff]
  %v129 = vld [vmem:[%s2 + $0x68] sm:$0xff]
  %v130 = vld [vmem:[%s2 + $0x70] sm:$0xff]
  %v131 = vld [vmem:[%s2 + $0x78] sm:$0xff]
  %v132 = vld [vmem:[%s3] sm:$0x1]
  %v134 = vlaneseq
  %v135 = vshrl.u32 %v134, 7
  %v136 = vsub.s32 0, %v135
  %v137 = vrot.slane %v132, %v136
  %139 = vmatprep.subr.mxu0 0.0
  %140 = vmatpush1.msra.mxu0 %v116
  %141 = vmatprep.subr.mxu0 0.0
  %142 = vmatpush1.msra.mxu0 %v117
  %143 = vmatprep.subr.mxu0 0.0
  %144 = vmatpush1.msra.mxu0 %v118
  %145 = vmatprep.subr.mxu0 0.0
  %146 = vmatpush1.msra.mxu0 %v119
  %147 = vmatprep.subr.mxu0 0.0
  %148 = vmatpush1.msra.mxu0 %v120
  %149 = vmatprep.subr.mxu0 0.0
  %150 = vmatpush1.msra.mxu0 %v121
  %151 = vmatprep.subr.mxu0 0.0
  %152 = vmatpush1.msra.mxu0 %v122
  %153 = vmatprep.subr.mxu0 0.0
  %154 = vmatpush1.msra.mxu0 %v123
  %155 = vmatprep.subr.mxu0 0.0
  %156 = vmatpush1.msra.mxu0 %v124
  %157 = vmatprep.subr.mxu0 0.0
  %158 = vmatpush1.msra.mxu0 %v125
  %159 = vmatprep.subr.mxu0 0.0
  %160 = vmatpush1.msra.mxu0 %v126
  %161 = vmatprep.subr.mxu0 0.0
  %162 = vmatpush1.msra.mxu0 %v127
  %163 = vmatprep.subr.mxu0 0.0
  %164 = vmatpush1.msra.mxu0 %v128
  %165 = vmatprep.subr.mxu0 0.0
  %166 = vmatpush1.msra.mxu0 %v129
  %167 = vmatprep.subr.mxu0 0.0
  %168 = vmatpush1.msra.mxu0 %v130
  %169 = vmatprep.subr.mxu0 0.0
  %170 = vmatpush1.msra.mxu0 %v131
  %171 = vmatprep.subr.mxu0 0.0
  %172 = vmatpush1.msra.mxu0 0.0
  %173 = vmatprep.subr.mxu0 0.0
  %174 = vmatpush1.msra.mxu0 0.0
  %175 = vmatprep.subr.mxu0 0.0
  %176 = vmatpush1.msra.mxu0 0.0
  %177 = vmatprep.subr.mxu0 0.0
  %178 = vmatpush1.msra.mxu0 0.0
  %179 = vmatprep.subr.mxu0 0.0
  %180 = vmatpush1.msra.mxu0 0.0
  %181 = vmatprep.subr.mxu0 0.0
  %182 = vmatpush1.msra.mxu0 0.0
  %183 = vmatprep.subr.mxu0 0.0
  %184 = vmatpush1.msra.mxu0 0.0
  %185 = vmatprep.subr.mxu0 0.0
  %186 = vmatpush1.msra.mxu0 0.0
  %187 = vmatprep.subr.mxu0 0.0
  %188 = vmatpush1.msra.mxu0 0.0
  %189 = vmatprep.subr.mxu0 0.0
  %190 = vmatpush1.msra.mxu0 0.0
  %191 = vmatprep.subr.mxu0 0.0
  %192 = vmatpush1.msra.mxu0 0.0
  %193 = vmatprep.subr.mxu0 0.0
  %194 = vmatpush1.msra.mxu0 0.0
  %195 = vmatprep.subr.mxu0 0.0
  %196 = vmatpush1.msra.mxu0 0.0
  %197 = vmatprep.subr.mxu0 0.0
  %198 = vmatpush1.msra.mxu0 0.0
  %199 = vmatprep.subr.mxu0 0.0
  %200 = vmatpush1.msra.mxu0 0.0
  %201 = vmatprep.subr.mxu0 0.0
  %202 = vmatpush1.msra.mxu0 0.0
  %203 = vmatprep.mubr.f32.mxu0 0.0
  %204 = vmatmul.mubr.f32.gmra.mrb[0].mxu0 %v113
  %v205 = vpop.f32.mrb[0].mxu0
  %v206 = vadd.f32 %v137, %v205
  %v207 = vpop.f32.mrb[0].mxu0
  %208 = vdwg.mxu0
  %209 = vst [vmem:[%s4] sm:$0xff] %v206
  // Predicated region
  $region18: #{node2vec_forward.1} parent=0 // pred_check
    _
  $region19: #{node2vec_forward.1} parent=0 // pred_check_branch
    %211 = sbr.rel (0) target = $region21
  $region20: #{node2vec_forward.1} parent=0 // pred_region
    _
  $region21: #{node2vec_forward.1} parent=0 // pred_fallthru
    _
  // Predicated region
  $region22: #{node2vec_forward.1} parent=0 // pred_check
    _
  $region23: #{node2vec_forward.1} parent=0 // pred_check_branch
    %213 = sbr.rel (0) target = $region25
  $region24: #{node2vec_forward.1} parent=0 // pred_region
    _
  $region25: #{node2vec_forward.1} parent=0 // pred_fallthru
    _

</llo_original>
